<compile_context>
chip_gen: v7x
topology: tpu7x:2x2x1
jax: 0.10.0
libtpu: 0.0.40
codegen_flags: <defaults>
</compile_context>

<pallas_src>
import functools

import jax
import jax.numpy as jnp
from jax.experimental import pallas as pl
from jax.experimental.pallas import tpu as pltpu


def _moving_avg_kernel(x_ref, o_ref, pad_ref, *, kernel_size, stride, pad, L, tile_t):
    # x_ref:   (L, TILE_C)       unpadded input block for this (batch, channel-tile)
    # o_ref:   (TILE_T, TILE_C)  one output time tile
    # pad_ref: (S, TILE_C)       VMEM scratch holding the replicate-padded time axis
    #                            (+ slack rows so partial last tiles never read OOB);
    #                            built once per (b, c) at t == 0 (t is innermost axis).
    t = pl.program_id(2)
    tile_c = x_ref.shape[1]
    scratch_rows = pad_ref.shape[0]
    itemsize = jnp.dtype(x_ref.dtype).itemsize
    # Chunk the VMEM->VMEM copy so no single live value exceeds ~128 KiB of vregs.
    chunk = max(8, (128 * 1024) // (tile_c * itemsize))

    @pl.when(t == 0)
    def _build_padded():
        # middle: plain copy of the block
        for r0 in range(0, L, chunk):
            n = min(chunk, L - r0)
            pad_ref[pl.ds(pad + r0, n), :] = x_ref[pl.ds(r0, n), :]
        # front: replicate the first time step `pad` times
        if pad > 0:
            first = x_ref[pl.ds(0, 1), :]
            pad_ref[pl.ds(0, pad), :] = jnp.broadcast_to(first, (pad, tile_c))
        # end: replicate the last time step over the end-padding + slack rows
        tail = scratch_rows - (pad + L)
        if tail > 0:
            last = x_ref[pl.ds(L - 1, 1), :]
            for r0 in range(0, tail, chunk):
                n = min(chunk, tail - r0)
                pad_ref[pl.ds(pad + L + r0, n), :] = jnp.broadcast_to(last, (n, tile_c))

    # Accumulate the pooling window; acc is (TILE_T, TILE_C) f32 and stays in vregs.
    base = t * (tile_t * stride)
    acc = jnp.zeros(o_ref.shape, jnp.float32)
    for j in range(kernel_size):  # static unroll over the pooling window
        if stride == 1:
            win = pad_ref[pl.ds(base + j, tile_t), :]
        else:
            win = pad_ref[pl.ds(base + j, tile_t, stride=stride), :]
        acc = acc + win.astype(jnp.float32)
    o_ref[...] = (acc * (1.0 / kernel_size)).astype(o_ref.dtype)


def moving_avg(x, kernel_size, stride):
    """Equivalent of moving_avg(kernel_size, stride).forward(x) for x of shape (B, L, C)."""
    B, L, C = x.shape
    pad = (kernel_size - 1) // 2
    Lp = L + 2 * pad
    # AvgPool1d semantics: floor((Lp - kernel_size) / stride) + 1 output steps.
    out_len = (Lp - kernel_size) // stride + 1
    assert out_len >= 1, "kernel_size/stride too large for this sequence length"

    # Channel tiling: lane-dense 128-wide tiles when C divides evenly, else the full C.
    if C % 128 == 0 and C > 128:
        tile_c = 128
    else:
        tile_c = C
    n_c = C // tile_c

    # Time tiling: size the f32 accumulator to ~64 KiB so it stays in vregs.
    cand = (64 * 1024) // (tile_c * 4)
    cand = max(8, min(512, (cand // 8) * 8))
    if out_len <= cand:
        tile_t = out_len            # single tile; block equals the full output dim
        n_t = 1
    else:
        tile_t = cand               # multiple of 8
        n_t = pl.cdiv(out_len, tile_t)

    # Padded-scratch rows: enough for every window read (incl. the partial last tile).
    scratch_rows = max((n_t * tile_t - 1) * stride + kernel_size, pad + L)

    kernel = functools.partial(
        _moving_avg_kernel,
        kernel_size=kernel_size,
        stride=stride,
        pad=pad,
        L=L,
        tile_t=tile_t,
    )

    itemsize = jnp.dtype(x.dtype).itemsize
    need = itemsize * tile_c * (2 * L + 2 * tile_t + scratch_rows)
    vmem_limit = int(min(max(2 * need + (4 << 20), 16 << 20), 48 << 20))

    return pl.pallas_call(
        kernel,
        out_shape=jax.ShapeDtypeStruct((B, out_len, C), x.dtype),
        grid_spec=pltpu.PrefetchScalarGridSpec(
            num_scalar_prefetch=0,
            grid=(B, n_c, n_t),
            # Input block index is constant over the time-tile axis -> fetched from HBM
            # once per (b, c) and kept resident in VMEM across all time tiles.
            in_specs=[pl.BlockSpec((None, L, tile_c), lambda b, c, t: (b, 0, c))],
            out_specs=pl.BlockSpec((None, tile_t, tile_c), lambda b, c, t: (b, t, c)),
            scratch_shapes=[pltpu.VMEM((scratch_rows, tile_c), x.dtype)],
        ),
        compiler_params=pltpu.CompilerParams(
            dimension_semantics=("parallel", "parallel", "arbitrary"),
            vmem_limit_bytes=vmem_limit,
        ),
    )(x)


def _reference_moving_avg(x, kernel_size, stride):
    """Pure-JAX reference mirroring the PyTorch forward."""
    pad = (kernel_size - 1) // 2
    if pad > 0:
        front = jnp.repeat(x[:, :1, :], pad, axis=1)
        end = jnp.repeat(x[:, -1:, :], pad, axis=1)
        xp = jnp.concatenate([front, x, end], axis=1)
    else:
        xp = x
    Lp = xp.shape[1]
    out_len = (Lp - kernel_size) // stride + 1
    idx = jnp.arange(out_len) * stride
    gather = idx[:, None] + jnp.arange(kernel_size)[None, :]      # (out_len, k)
    windows = xp[:, gather, :]                                    # (B, out_len, k, C)
    return jnp.mean(windows, axis=2)


if __name__ == "__main__":
    key = jax.random.PRNGKey(0)
    k1, k2 = jax.random.split(key)

    # 1) Small shape matching the module's typical use (stride=1 series decomposition).
    B, L, C = 2, 16, 32
    kernel_size, stride = 5, 1
    x = jax.random.normal(k1, (B, L, C), dtype=jnp.float32)
    out = jax.block_until_ready(moving_avg(x, kernel_size, stride))
    ref = _reference_moving_avg(x, kernel_size, stride)
    assert out.shape == ref.shape, (out.shape, ref.shape)
    assert jnp.allclose(out, ref, atol=1e-5, rtol=1e-5), "mismatch vs reference (stride=1)"

    # 2) stride > 1 path (strided pl.ds reads from the padded VMEM scratch).
    out2 = jax.block_until_ready(moving_avg(x, 5, 2))
    ref2 = _reference_moving_avg(x, 5, 2)
    assert out2.shape == ref2.shape, (out2.shape, ref2.shape)
    assert jnp.allclose(out2, ref2, atol=1e-5, rtol=1e-5), "mismatch vs reference (stride=2)"

    # 3) Multi-time-tile path with a partial last tile (still small data).
    x3 = jax.random.normal(k2, (1, 520, 32), dtype=jnp.float32)
    out3 = jax.block_until_ready(moving_avg(x3, 25, 1))
    ref3 = _reference_moving_avg(x3, 25, 1)
    assert out3.shape == ref3.shape, (out3.shape, ref3.shape)
    assert jnp.allclose(out3, ref3, atol=1e-5, rtol=1e-5), "mismatch vs reference (tiled)"

    print("KERNEL_OK")
</pallas_src>

<mosaic_0001>
module attributes {stable_mosaic.version = 11 : i64} {
  func.func @_moving_avg_kernel(%arg0: i32, %arg1: i32, %arg2: i32, %arg3: memref<1x16x32xf32, #tpu.memory_space<vmem>>, %arg4: memref<1x16x32xf32, #tpu.memory_space<vmem>>, %arg5: memref<20x32xf32, #tpu.memory_space<vmem>>) attributes {dimension_semantics = [#tpu.dimension_semantics<parallel>, #tpu.dimension_semantics<parallel>, #tpu.dimension_semantics<arbitrary>], iteration_bounds = array<i64: 2, 1, 1>, scalar_prefetch = 0 : i64, scratch_operands = 1 : i64, tpu.core_type = #tpu.core_type<tc>, window_params = [{transform_indices = @transform_0, window_bounds = array<i64: 1, 16, 32>}, {transform_indices = @transform_1, window_bounds = array<i64: 1, 16, 32>}]} {
    %c0_i32 = arith.constant 0 : i32
    %0 = arith.cmpi eq, %arg2, %c0_i32 : i32
    %1 = arith.extui %0 : i1 to i32
    %c0_i32_0 = arith.constant 0 : i32
    %2 = arith.cmpi ne, %1, %c0_i32_0 : i32
    scf.if %2 {
      %c0_10 = arith.constant 0 : index
      %c0_11 = arith.constant 0 : index
      %c0_12 = arith.constant 0 : index
      %30 = vector.load %arg3[%c0_10, %c0_11, %c0_12] : memref<1x16x32xf32, #tpu.memory_space<vmem>>, vector<1x16x32xf32>
      %31 = vector.shape_cast %30 : vector<1x16x32xf32> to vector<16x32xf32>
      %c2 = arith.constant 2 : index
      %c0_13 = arith.constant 0 : index
      %32 = vector.load %arg5[%c2, %c0_13] : memref<20x32xf32, #tpu.memory_space<vmem>>, vector<16x32xf32>
      tpu.vector_store %arg5[%c2, %c0_13], %31 {strides = array<i32>} : memref<20x32xf32, #tpu.memory_space<vmem>>, vector<16x32xf32>,
      %c0_14 = arith.constant 0 : index
      %c0_15 = arith.constant 0 : index
      %c0_16 = arith.constant 0 : index
      %33 = vector.load %arg3[%c0_14, %c0_15, %c0_16] : memref<1x16x32xf32, #tpu.memory_space<vmem>>, vector<1x1x32xf32>
      %34 = vector.shape_cast %33 : vector<1x1x32xf32> to vector<1x32xf32>
      %35 = vector.shape_cast %34 : vector<1x32xf32> to vector<1x32xf32>
      %36 = vector.broadcast %35 : vector<1x32xf32> to vector<2x32xf32>
      %c0_17 = arith.constant 0 : index
      %c0_18 = arith.constant 0 : index
      %37 = vector.load %arg5[%c0_17, %c0_18] : memref<20x32xf32, #tpu.memory_space<vmem>>, vector<2x32xf32>
      tpu.vector_store %arg5[%c0_17, %c0_18], %36 {strides = array<i32>} : memref<20x32xf32, #tpu.memory_space<vmem>>, vector<2x32xf32>,
      %c0_19 = arith.constant 0 : index
      %c15 = arith.constant 15 : index
      %c0_20 = arith.constant 0 : index
      %38 = vector.load %arg3[%c0_19, %c15, %c0_20] : memref<1x16x32xf32, #tpu.memory_space<vmem>>, vector<1x1x32xf32>
      %39 = vector.shape_cast %38 : vector<1x1x32xf32> to vector<1x32xf32>
      %40 = vector.shape_cast %39 : vector<1x32xf32> to vector<1x32xf32>
      %41 = vector.broadcast %40 : vector<1x32xf32> to vector<2x32xf32>
      %c18 = arith.constant 18 : index
      %c0_21 = arith.constant 0 : index
      %42 = vector.load %arg5[%c18, %c0_21] : memref<20x32xf32, #tpu.memory_space<vmem>>, vector<2x32xf32>
      tpu.vector_store %arg5[%c18, %c0_21], %41 {strides = array<i32>} : memref<20x32xf32, #tpu.memory_space<vmem>>, vector<2x32xf32>,
    } else {
    }
    %c16_i32 = arith.constant 16 : i32
    %3 = arith.muli %arg2, %c16_i32 : i32
    %cst = arith.constant 0.000000e+00 : f32
    %4 = vector.broadcast %cst : f32 to vector<16x32xf32>
    %c0_i32_1 = arith.constant 0 : i32
    %5 = arith.addi %3, %c0_i32_1 : i32
    %6 = arith.index_cast %5 : i32 to index
    %c0 = arith.constant 0 : index
    %7 = vector.load %arg5[%6, %c0] : memref<20x32xf32, #tpu.memory_space<vmem>>, vector<16x32xf32>
    %8 = arith.addf %4, %7 : vector<16x32xf32>
    %c1_i32 = arith.constant 1 : i32
    %9 = arith.addi %3, %c1_i32 : i32
    %10 = arith.index_cast %9 : i32 to index
    %c0_2 = arith.constant 0 : index
    %11 = vector.load %arg5[%10, %c0_2] : memref<20x32xf32, #tpu.memory_space<vmem>>, vector<16x32xf32>
    %12 = arith.addf %8, %11 : vector<16x32xf32>
    %c2_i32 = arith.constant 2 : i32
    %13 = arith.addi %3, %c2_i32 : i32
    %14 = arith.index_cast %13 : i32 to index
    %c0_3 = arith.constant 0 : index
    %15 = vector.load %arg5[%14, %c0_3] : memref<20x32xf32, #tpu.memory_space<vmem>>, vector<16x32xf32>
    %16 = arith.addf %12, %15 : vector<16x32xf32>
    %c3_i32 = arith.constant 3 : i32
    %17 = arith.addi %3, %c3_i32 : i32
    %18 = arith.index_cast %17 : i32 to index
    %c0_4 = arith.constant 0 : index
    %19 = vector.load %arg5[%18, %c0_4] : memref<20x32xf32, #tpu.memory_space<vmem>>, vector<16x32xf32>
    %20 = arith.addf %16, %19 : vector<16x32xf32>
    %c4_i32 = arith.constant 4 : i32
    %21 = arith.addi %3, %c4_i32 : i32
    %22 = arith.index_cast %21 : i32 to index
    %c0_5 = arith.constant 0 : index
    %23 = vector.load %arg5[%22, %c0_5] : memref<20x32xf32, #tpu.memory_space<vmem>>, vector<16x32xf32>
    %24 = arith.addf %20, %23 : vector<16x32xf32>
    %cst_6 = arith.constant 2.000000e-01 : f32
    %25 = vector.broadcast %cst_6 : f32 to vector<16x32xf32>
    %26 = arith.mulf %24, %25 : vector<16x32xf32>
    %c0_7 = arith.constant 0 : index
    %c0_8 = arith.constant 0 : index
    %c0_9 = arith.constant 0 : index
    %27 = vector.load %arg4[%c0_7, %c0_8, %c0_9] : memref<1x16x32xf32, #tpu.memory_space<vmem>>, vector<1x16x32xf32>
    %28 = vector.shape_cast %27 : vector<1x16x32xf32> to vector<16x32xf32>
    %29 = vector.shape_cast %26 : vector<16x32xf32> to vector<1x16x32xf32>
    tpu.vector_store %arg4[%c0_7, %c0_8, %c0_9], %29 {strides = array<i32>} : memref<1x16x32xf32, #tpu.memory_space<vmem>>, vector<1x16x32xf32>,
    return
  }
  func.func @transform_0(%arg0: i32, %arg1: i32, %arg2: i32) -> (i32, i32, i32) {
    %c0_i32 = arith.constant 0 : i32
    %c0_i32_0 = arith.constant 0 : i32
    return %arg0, %c0_i32, %arg1 : i32, i32, i32
  }
  func.func @transform_1(%arg0: i32, %arg1: i32, %arg2: i32) -> (i32, i32, i32) {
    %c0_i32 = arith.constant 0 : i32
    return %arg0, %arg2, %arg1 : i32, i32, i32
  }
}

</mosaic_0001>

<llo_original>
// kernel: tpu_custom_call.1
$region0: #{tpu_custom_call.1}
  #allocation0 [shape = 'u32[]', space=smem, size = 0x4, offset = 0x4, fixed_abs, tag = 'smem constant byte address 0x4 - core index']
  #allocation1 [shape = 'u32[144,128]{1,0:T(1,128)}', space=vmem, size = 0x12000, scoped, tag = 'internal scratch']
  #allocation2 [shape = 'f32[20,32]{1,0:T(8,128)}', space=vmem, size = 0x3000, scoped, tag = 'scratch operand']
  %s0 = inlined_call_operand.hbm [shape: f32[2,16,32], index: 0, kind: input, shape index: {}]
  %s1 = inlined_call_operand.hbm [shape: f32[2,16,32], index: 1, kind: output, shape index: {}]
  %s2 = sld [smem:[#allocation0]]
  $region45: #{tpu_custom_call.1} parent=0
    _
  %s4 = ssub.s32 1, %s2
  %s5 = scalar_select 0, %s4, %s2
  $region1: #{tpu_custom_call.1} parent=0
    #allocation3 [shape = 'u8[16384]{0}', space=vmem, size = 0x4000, scoped, tag = 'input window, operand 0']
    #allocation4 [shape = 's32[2]{0}', space=sflag, size = 0x8, scoped, tag = 'scoped memory for tpu_custom_call.1']
    #allocation5 [shape = 's32[2]{0}', space=sflag, size = 0x8, scoped, tag = 'scoped memory for tpu_custom_call.1']
    #allocation6 [shape = 'u8[16384]{0}', space=vmem, size = 0x4000, scoped, tag = 'output window, operand 0']
    %6 = vsyncpa [#allocation4], 0
    %s7 = scalar_lea.sflag [#allocation4], 1
    %8 = vsyncpa %s7, 0
    %9 = vsyncpa [#allocation5], 0
    %s10 = scalar_lea.sflag [#allocation5], 1
    %11 = vsyncpa %s10, 0
    loop: start=0, step=1, limit=4
    $region2: #{tpu_custom_call.1} parent=1 // loop_pre_header
      _
    $region3: #{tpu_custom_call.1} parent=1 // loop_header
      %s13 = sphi 0, %s17
      %p14 = scmp.ge.s32.totalorder %s13, 4
      %s20 = sphi 0, %s39
      %s21 = sphi 0, %s35
      %s22 = sphi 0, %s31
      %s23 = sphi 0, %s20
      %s24 = sphi 0, %s21
      %s25 = sphi 0, %s22
      %s26 = sphi 0, %s23
      %s27 = sphi 0, %s24
      %s28 = sphi 0, %s25
      %s44 = sphi 0, %s46
      %s47 = sphi 0, %s44
      %s48 = sphi 0, %s47
      %s64 = sphi 0, %s48
      %s74 = sphi 0, %s76
      %s77 = sphi 0, %s74
      %s78 = sphi 0, %s77
      %s94 = sphi 0, %s78
    $region4: #{tpu_custom_call.1} parent=1 // loop_header_branch
      %16 = sbr.rel (%p14) target = $region8
    $region5: #{tpu_custom_call.1} parent=1 // loop_body
      %s18 = ssub.s32 %s13, 1
      %s19 = ssub.s32 %s13, 2
      %s29 = sadd.s32 1, %s22
      %p30 = scmp.ge.s32.totalorder %s29, 1
      %s31 = scalar_select %p30, 0, %s29
      %s32 = sadd.s32 1, %s21
      %s33 = scalar_select %p30, %s32, %s21
      %p34 = scmp.ge.s32.totalorder %s33, 1
      %s35 = scalar_select %p34, 0, %s33
      %s36 = sadd.s32 1, %s20
      %s37 = scalar_select %p34, %s36, %s20
      %p38 = scmp.ge.s32.totalorder %s37, 2
      %s39 = scalar_select %p38, 0, %s37
      %s40 = ssub.s32 %s20, %s39
      %s41 = ssub.s32 %s21, %s35
      %s42 = sor.u32 %s40, %s41
      %p43 = scmp.eq.s32.totalorder %s42, 0
      %s45 = sadd.s32 %s44, 1
      %s46 = scalar_select %p43, %s44, %s45
      %p49 = pneg %p43
      %p50 = scmp.eq.s32.totalorder %s13, 1
      %p51 = por %p49, %p50
      %p52 = scmp.ne.s32.totalorder %s44, %s47
      %p53 = scmp.eq.s32.totalorder %s13, 0
      %p54 = por %p52, %p53
      %p55 = scmp.ne.s32.totalorder %s44, %s47
      %p56 = scmp.eq.s32.totalorder %s18, 1
      %p57 = por %p55, %p56
      %p58 = scmp.ne.s32.totalorder %s47, %s48
      %p59 = scmp.eq.s32.totalorder %s18, 0
      %p60 = por %p58, %p59
      %p61 = scmp.ne.s32.totalorder %s47, %s48
      %p62 = scmp.eq.s32.totalorder %s19, 1
      %p63 = por %p61, %p62
      %p65 = scmp.ne.s32.totalorder %s48, %s64
      %p66 = scmp.eq.s32.totalorder %s19, 0
      %p67 = por %p65, %p66
      %s68 = ssub.s32 %s20, %s39
      %s69 = ssub.s32 %s22, %s31
      %s70 = sor.u32 %s68, %s69
      %s71 = ssub.s32 %s21, %s35
      %s72 = sor.u32 %s70, %s71
      %p73 = scmp.eq.s32.totalorder %s72, 0
      %s75 = sadd.s32 %s74, 1
      %s76 = scalar_select %p73, %s74, %s75
      %p79 = pneg %p73
      %p80 = scmp.eq.s32.totalorder %s13, 1
      %p81 = por %p79, %p80
      %p82 = scmp.ne.s32.totalorder %s74, %s77
      %p83 = scmp.eq.s32.totalorder %s13, 0
      %p84 = por %p82, %p83
      %p85 = scmp.ne.s32.totalorder %s74, %s77
      %p86 = scmp.eq.s32.totalorder %s18, 1
      %p87 = por %p85, %p86
      %p88 = scmp.ne.s32.totalorder %s77, %s78
      %p89 = scmp.eq.s32.totalorder %s18, 0
      %p90 = por %p88, %p89
      %p91 = scmp.ne.s32.totalorder %s77, %s78
      %p92 = scmp.eq.s32.totalorder %s19, 1
      %p93 = por %p91, %p92
      %p95 = scmp.ne.s32.totalorder %s78, %s94
      %p96 = scmp.eq.s32.totalorder %s19, 0
      %p97 = por %p95, %p96
      %p98 = scmp.le.s32.totalorder 1, %s13
      %p99 = scmp.lt.s32.totalorder %s13, 3
      %p100 = pnand %p98, %p99
      %p101 = pneg %p100
      // Predicated region
      $region9: #{tpu_custom_call.1} parent=5 // pred_check
        _
      $region10: #{tpu_custom_call.1} parent=5 // pred_check_branch
        %103 = sbr.rel (%p100) target = $region12
      $region11: #{tpu_custom_call.1} parent=5 // pred_region
        %s104 = ssub.s32 %s13, 1
      $region12: #{tpu_custom_call.1} parent=5 // pred_fallthru
        _
      %p105 = scmp.lt.s32.totalorder %s13, 2
      // Predicated region
      $region13: #{tpu_custom_call.1} parent=5 // pred_check
        %p106 = pneg %p105
      $region14: #{tpu_custom_call.1} parent=5 // pred_check_branch
        %108 = sbr.rel (%p106) target = $region16
      $region15: #{tpu_custom_call.1} parent=5 // pred_region
        // Predicated region
        $region17: #{tpu_custom_call.1} parent=15 // pred_check
          %p109 = pneg %p54
        $region18: #{tpu_custom_call.1} parent=15 // pred_check_branch
          %111 = sbr.rel (%p109) target = $region20
        $region19: #{tpu_custom_call.1} parent=15 // pred_region
          %s112 = sand.u32 %s44, 1
          %s113 = scalar_lea.sflag [#allocation4], %s112
          %s114 = sand.u32 %s44, 1
          %s115 = smul.addr %s114, 16
          %s116 = scalar_lea.vmem [#allocation3], %s115
          %s118 = ssub.s32 256, 256
          %119 = vsyncadd %s113, %s118
          %s120 = smul.addr %s20, 2
          %s121 = sadd.s32 %s21, %s120
          %s122 = smul.addr %s121, 128
          %s123 = scalar_lea.hbm %s0, %s122
          %s124 = sshll.u32 %s116, 4
          %s125 = int_to_ptr.vmem [resolvable:$true] %s124
          %130 = dma.hbm_to_vmem [thread:$0]  %s123, 256, %s125, %s113, 128, 128, 8
        $region20: #{tpu_custom_call.1} parent=15 // pred_fallthru
          _
      $region16: #{tpu_custom_call.1} parent=5 // pred_fallthru
        _
      %p131 = scmp.le.s32.totalorder 1, %s13
      %p132 = scmp.lt.s32.totalorder %s13, 3
      %p133 = pnand %p131, %p132
      %p134 = pneg %p133
      // Predicated region
      $region21: #{tpu_custom_call.1} parent=5 // pred_check
        _
      $region22: #{tpu_custom_call.1} parent=5 // pred_check_branch
        %136 = sbr.rel (%p133) target = $region24
      $region23: #{tpu_custom_call.1} parent=5 // pred_region
        %s137 = ssub.s32 %s13, 1
        %s138 = sand.u32 %s47, 1
        %s139 = scalar_lea.sflag [#allocation4], %s138
        %s140 = sand.u32 %s47, 1
        %s141 = smul.addr %s140, 16
        %s142 = scalar_lea.vmem [#allocation3], %s141
        // Predicated region
        $region25: #{tpu_custom_call.1} parent=23 // pred_check
          %p143 = pneg %p60
        $region26: #{tpu_custom_call.1} parent=23 // pred_check_branch
          %145 = sbr.rel (%p143) target = $region28
        $region27: #{tpu_custom_call.1} parent=23 // pred_region
          %146 = dma.done %s139, 256
        $region28: #{tpu_custom_call.1} parent=23 // pred_fallthru
          _
        %s147 = sand.u32 %s47, 1
        %s148 = scalar_lea.sflag [#allocation4], %s147
        %s149 = sand.u32 %s47, 1
        %s150 = smul.addr %s149, 16
        %s151 = scalar_lea.vmem [#allocation3], %s150
        %p152 = pneg %p60
        %p153 = pneg %p57
        %p154 = pneg %p90
        %p155 = pneg %p87
        %s156 = sand.u32 %s77, 1
        %s157 = scalar_lea.sflag [#allocation5], %s156
        %s158 = sand.u32 %s77, 1
        %s159 = smul.addr %s158, 16
        %s160 = scalar_lea.vmem [#allocation6], %s159
        %s161 = smul.u32 2, %s25
        %p162 = scmp.eq.s32.totalorder %s25, 0
        // Predicated region
        $region29: #{tpu_custom_call.1} parent=23 // pred_check
          %p163 = pneg %p162
        $region30: #{tpu_custom_call.1} parent=23 // pred_check_branch
          %165 = sbr.rel (%p163) target = $region32
        $region31: #{tpu_custom_call.1} parent=23 // pred_region
          %v166 = vld [vmem:[%s142] sm:$0xff]
          %v167 = vld [vmem:[%s142 + $0x8] sm:$0xff]
          %vm168 = vcmask 261120
          %169 = vst.msk [vmem:[#allocation2 + $0x2] sm:$0xff] %vm168, %v166
          %170 = vst.msk [vmem:[#allocation2 + $0xa] sm:$0xff] %vm168, %v167
          %v171 = vld [vmem:[%s142] sm:$0x1]
          %v172 = vlaneseq
          %v173 = vshrl.u32 %v172, 7
          %v174 = vsub.s32 0, %v173
          %v175 = vrot.slane %v171, %v174
          %vm176 = vcmask 254976
          %177 = vst.msk [vmem:[#allocation2] sm:$0x3] %vm176, %v175
          %v178 = vld [vmem:[%s142 + $0xf] sm:$0x1]
          %v179 = vlaneseq
          %v180 = vshrl.u32 %v179, 7
          %v181 = vsub.s32 0, %v180
          %v182 = vrot.slane %v178, %v181
          %183 = vst.msk [vmem:[#allocation2 + $0x12] sm:$0x3] %vm176, %v182
        $region32: #{tpu_custom_call.1} parent=23 // pred_fallthru
          _
        %s184 = smul.u32 %s25, 16
        %s185 = scalar_lea.vmem [#allocation2], %s184
        %v186 = vld [vmem:[%s185] sm:$0xff]
        %v187 = vld [vmem:[%s185 + $0x8] sm:$0xff]
        %v188 = vadd.f32 %v186, 0.0
        %v189 = vadd.f32 %v187, 0.0
        %s190 = sadd.s32 %s184, 1
        %s191 = scalar_lea.vmem [#allocation2], %s190
        %v192 = vld [vmem:[%s191] sm:$0xff]
        %v193 = vld [vmem:[%s191 + $0x8] sm:$0xff]
        %v194 = vadd.f32 %v188, %v192
        %v195 = vadd.f32 %v189, %v193
        %s196 = sadd.s32 %s184, 2
        %s197 = scalar_lea.vmem [#allocation2], %s196
        %v198 = vld [vmem:[%s197] sm:$0xff]
        %v199 = vld [vmem:[%s197 + $0x8] sm:$0xff]
        %v200 = vadd.f32 %v194, %v198
        %v201 = vadd.f32 %v195, %v199
        %s202 = sadd.s32 %s184, 3
        %s203 = scalar_lea.vmem [#allocation2], %s202
        %v204 = vld [vmem:[%s203] sm:$0xff]
        %v205 = vld [vmem:[%s203 + $0x8] sm:$0xff]
        %v206 = vadd.f32 %v200, %v204
        %v207 = vadd.f32 %v201, %v205
        %s208 = sadd.s32 %s184, 4
        %s209 = scalar_lea.vmem [#allocation2], %s208
        %v210 = vld [vmem:[%s209] sm:$0xff]
        %v211 = vld [vmem:[%s209 + $0x8] sm:$0xff]
        %v212 = vadd.f32 %v206, %v210
        %v213 = vadd.f32 %v207, %v211
        %v214 = vmul.f32 %v212, 0.2
        %v215 = vmul.f32 %v213, 0.2
        %vm216 = vcmask 261120
        %217 = vst.msk [vmem:[%s160] sm:$0xff] %vm216, %v214
        %218 = vst.msk [vmem:[%s160 + $0x8] sm:$0xff] %vm216, %v215
        %s219 = sand.u32 %s77, 1
        %s220 = scalar_lea.sflag [#allocation5], %s219
        %s221 = sand.u32 %s77, 1
        %s222 = smul.addr %s221, 16
        %s223 = scalar_lea.vmem [#allocation6], %s222
        // Predicated region
        $region33: #{tpu_custom_call.1} parent=23 // pred_check
          %p224 = pneg %p87
        $region34: #{tpu_custom_call.1} parent=23 // pred_check_branch
          %226 = sbr.rel (%p224) target = $region36
        $region35: #{tpu_custom_call.1} parent=23 // pred_region
          %s227 = smul.u32 2, %s25
          %s229 = ssub.s32 256, 256
          %230 = vsyncadd %s220, %s229
          %s231 = sadd.s32 %s24, %s227
          %s232 = smul.addr %s23, 2
          %s233 = sadd.s32 %s231, %s232
          %s234 = smul.addr %s233, 128
          %s235 = scalar_lea.hbm %s1, %s234
          %s236 = sshll.u32 %s223, 4
          %s237 = int_to_ptr.vmem [resolvable:$true] %s236
          %242 = dma.vmem_to_hbm [thread:$0]  %s237, 256, %s235, %s220, 128, 128, 8
        $region36: #{tpu_custom_call.1} parent=23 // pred_fallthru
          _
      $region24: #{tpu_custom_call.1} parent=5 // pred_fallthru
        _
      %p243 = scmp.le.s32.totalorder 2, %s13
      // Predicated region
      $region37: #{tpu_custom_call.1} parent=5 // pred_check
        %p244 = pneg %p243
      $region38: #{tpu_custom_call.1} parent=5 // pred_check_branch
        %246 = sbr.rel (%p244) target = $region40
      $region39: #{tpu_custom_call.1} parent=5 // pred_region
        %s247 = ssub.s32 %s13, 2
        // Predicated region
        $region41: #{tpu_custom_call.1} parent=39 // pred_check
          %p248 = pneg %p93
        $region42: #{tpu_custom_call.1} parent=39 // pred_check_branch
          %250 = sbr.rel (%p248) target = $region44
        $region43: #{tpu_custom_call.1} parent=39 // pred_region
          %s251 = sand.u32 %s78, 1
          %s252 = scalar_lea.sflag [#allocation5], %s251
          %s253 = sand.u32 %s78, 1
          %s254 = smul.addr %s253, 16
          %s255 = scalar_lea.vmem [#allocation6], %s254
          %256 = dma.done %s252, 256
        $region44: #{tpu_custom_call.1} parent=39 // pred_fallthru
          _
      $region40: #{tpu_custom_call.1} parent=5 // pred_fallthru
        _
    $region6: #{tpu_custom_call.1} parent=1 // loop_footer
      %s17 = sadd.s32 1, %s13
    $region7: #{tpu_custom_call.1} parent=1 // loop_footer_branch
      %12 = sbr.rel target = $region3
    $region8: #{tpu_custom_call.1} parent=1 // loop_exit
      _
    %257 = vsyncpa [#allocation4], 1
    %s258 = scalar_lea.sflag [#allocation4], 1
    %259 = vsyncpa %s258, 1
    %260 = vsyncpa [#allocation5], 1
    %s261 = scalar_lea.sflag [#allocation5], 1
    %262 = vsyncpa %s261, 1

</llo_original>
